<compile_context>
chip_gen: v5e
topology: v5e:2x2
jax: 0.10.0
libtpu: 0.0.40
codegen_flags: <defaults>
</compile_context>

<pallas_src>
import functools

import jax
import jax.numpy as jnp
from jax.experimental import pallas as pl
from jax.experimental.pallas import tpu as pltpu


def _kl_pointwise(x, t):
    """Pointwise KL(softmax(t) || softmax(x)) terms for one (rows, D) tile (f32)."""
    x = x.astype(jnp.float32)
    t = t.astype(jnp.float32)

    # log_softmax(logits), numerically stable.
    x_max = jnp.max(x, axis=-1, keepdims=True)
    x_sh = x - x_max
    x_lse = jnp.log(jnp.sum(jnp.exp(x_sh), axis=-1, keepdims=True))
    x_logsm = x_sh - x_lse

    # softmax(targets) / log_softmax(targets): reuse a single exp(t_sh).
    t_max = jnp.max(t, axis=-1, keepdims=True)
    t_sh = t - t_max
    e_t = jnp.exp(t_sh)
    s_t = jnp.sum(e_t, axis=-1, keepdims=True)
    t_logsm = t_sh - jnp.log(s_t)
    t_sm = e_t * pl.reciprocal(s_t)  # exact reciprocal (EUP path)

    return t_sm * (t_logsm - x_logsm)


def _kl_partial_sum_kernel(logits_ref, targets_ref, psum_ref, *, tb, n_rows):
    """Reduction variant: per-tile scalar partial sum, no (B, D) writeback."""
    pw = _kl_pointwise(logits_ref[...], targets_ref[...])
    # Mask rows past the end of the array (partial last tile).
    i = pl.program_id(0)
    row = jax.lax.broadcasted_iota(jnp.int32, (pw.shape[0], 1), 0)
    valid = (i * tb + row) < n_rows
    pw = jnp.where(valid, pw, 0.0)
    partial = jnp.sum(pw)
    # Lane-dense (1, 8, 128) block; only element [0, 0, 0] is read back.
    psum_ref[...] = jnp.broadcast_to(partial, psum_ref.shape).astype(jnp.float32)


def _kl_none_kernel(logits_ref, targets_ref, pw_ref):
    """'none' variant: write the pointwise tensor (in the promoted input dtype)."""
    pw_ref[...] = _kl_pointwise(logits_ref[...], targets_ref[...]).astype(pw_ref.dtype)


def _choose_row_tile(n_rows, d):
    """Largest row tile with a ~2 MiB f32 input block, multiple of 8, <= 1024."""
    tb = (2 * 1024 * 1024) // max(4 * d, 1)
    tb = max(8, (tb // 8) * 8)
    tb = min(tb, 1024)
    return n_rows if tb >= n_rows else tb


def _vmem_limit(block_bytes):
    # 2x for headroom on top of the double-buffered block footprint; safe on
    # v7x's 64 MiB physical VMEM, comfortable on v5e/v6e's 128 MiB.
    return int(min(48 * 1024 * 1024, max(16 * 1024 * 1024, 2 * block_bytes)))


@functools.partial(jax.jit, static_argnames=("reduction",))
def kl_div_loss_with_logits(logits, targets, reduction: str = "batchmean"):
    assert logits.shape == targets.shape
    if reduction not in ("none", "sum", "mean", "batchmean"):
        raise NotImplementedError(f"reduction={reduction} is not supported")

    orig_shape = logits.shape
    batch_size = orig_shape[0]
    d = orig_shape[-1]
    x2 = logits.reshape(-1, d)
    t2 = targets.reshape(-1, d)
    n_rows = x2.shape[0]

    tb = _choose_row_tile(n_rows, d)
    num_tiles = pl.cdiv(n_rows, tb)
    in_itemsize = jnp.dtype(x2.dtype).itemsize
    out_dtype = jnp.promote_types(logits.dtype, targets.dtype)

    # TODO(synk): add an online-softmax variant that also tiles D for
    # vocab-sized class axes (D in the tens of thousands); D stays whole here.

    if reduction == "none":
        out_itemsize = jnp.dtype(out_dtype).itemsize
        need = 2 * 2 * tb * d * in_itemsize + 2 * tb * d * out_itemsize
        pw = pl.pallas_call(
            _kl_none_kernel,
            out_shape=jax.ShapeDtypeStruct((n_rows, d), out_dtype),
            grid_spec=pltpu.PrefetchScalarGridSpec(
                num_scalar_prefetch=0,
                grid=(num_tiles,),
                in_specs=[
                    pl.BlockSpec((tb, d), lambda i: (i, 0)),
                    pl.BlockSpec((tb, d), lambda i: (i, 0)),
                ],
                out_specs=pl.BlockSpec((tb, d), lambda i: (i, 0)),
            ),
            compiler_params=pltpu.CompilerParams(
                dimension_semantics=("parallel",),
                vmem_limit_bytes=_vmem_limit(need),
            ),
        )(x2, t2)
        return pw.reshape(orig_shape)

    # Reduction path: no pointwise writeback; per-tile partial sums only.
    need = 2 * 2 * tb * d * in_itemsize + 2 * 8 * 128 * 4
    psums = pl.pallas_call(
        functools.partial(_kl_partial_sum_kernel, tb=tb, n_rows=n_rows),
        out_shape=jax.ShapeDtypeStruct((num_tiles, 8, 128), jnp.float32),
        grid_spec=pltpu.PrefetchScalarGridSpec(
            num_scalar_prefetch=0,
            grid=(num_tiles,),
            in_specs=[
                pl.BlockSpec((tb, d), lambda i: (i, 0)),
                pl.BlockSpec((tb, d), lambda i: (i, 0)),
            ],
            out_specs=pl.BlockSpec((1, 8, 128), lambda i: (i, 0, 0)),
        ),
        compiler_params=pltpu.CompilerParams(
            dimension_semantics=("parallel",),
            vmem_limit_bytes=_vmem_limit(need),
        ),
    )(x2, t2)
    total = jnp.sum(psums[:, 0, 0])

    if reduction == "sum":
        return total
    if reduction == "mean":
        return total / (n_rows * d)
    return total / batch_size  # 'batchmean'


class KLDivLoss4Logits:
    """KLDivLoss with logits (JAX/Pallas port of freerec.criterions.KLDivLoss4Logits)."""

    def __init__(self, reduction: str = "batchmean") -> None:
        self.reduction = reduction

    def __call__(self, logits, targets, reduction=None):
        reduction = reduction if reduction is not None else self.reduction
        return kl_div_loss_with_logits(logits, targets, reduction)


def _reference(logits, targets, reduction="batchmean"):
    """Pure-JAX reference for correctness check."""
    log_p = jax.nn.log_softmax(logits.astype(jnp.float32), axis=-1)
    q = jax.nn.softmax(targets.astype(jnp.float32), axis=-1)
    log_q = jax.nn.log_softmax(targets.astype(jnp.float32), axis=-1)
    pw = q * (log_q - log_p)
    if reduction == "none":
        return pw
    s = jnp.sum(pw)
    if reduction == "sum":
        return s
    if reduction == "mean":
        return s / pw.size
    return s / logits.shape[0]  # batchmean


if __name__ == "__main__":
    key = jax.random.PRNGKey(0)
    k1, k2, k3, k4 = jax.random.split(key, 4)

    # Small shape consistent with the module: batch=8, num_classes=32.
    B, D = 8, 32
    logits = jax.random.normal(k1, (B, D), dtype=jnp.float32)
    targets = jax.random.normal(k2, (B, D), dtype=jnp.float32)

    criterion = KLDivLoss4Logits()  # default reduction='batchmean'
    loss = criterion(logits, targets)
    jax.block_until_ready(loss)
    ref = _reference(logits, targets, "batchmean")
    assert jnp.allclose(loss, ref, rtol=1e-5, atol=1e-5), (loss, ref)

    for red in ("sum", "mean", "none"):
        out = criterion(logits, targets, reduction=red)
        jax.block_until_ready(out)
        assert jnp.allclose(out, _reference(logits, targets, red),
                            rtol=1e-5, atol=1e-5), red

    # Larger, non-divisible batch to exercise multi-tile pipelining + masking.
    B2, D2 = 2052, 128
    logits2 = jax.random.normal(k3, (B2, D2), dtype=jnp.float32)
    targets2 = jax.random.normal(k4, (B2, D2), dtype=jnp.float32)
    for red in ("batchmean", "sum", "mean", "none"):
        out = criterion(logits2, targets2, reduction=red)
        jax.block_until_ready(out)
        assert jnp.allclose(out, _reference(logits2, targets2, red),
                            rtol=1e-4, atol=1e-5), red

    print("KERNEL_OK")
</pallas_src>

<mosaic_0001>
module attributes {stable_mosaic.version = 11 : i64} {
  func.func @_kl_partial_sum_kernel(%arg0: i32, %arg1: memref<8x32xf32, #tpu.memory_space<vmem>>, %arg2: memref<8x32xf32, #tpu.memory_space<vmem>>, %arg3: memref<1x8x128xf32, #tpu.memory_space<vmem>>) attributes {dimension_semantics = [#tpu.dimension_semantics<parallel>], iteration_bounds = array<i64: 1>, scalar_prefetch = 0 : i64, scratch_operands = 0 : i64, tpu.core_type = #tpu.core_type<tc>, window_params = [{transform_indices = @transform_0, window_bounds = array<i64: 8, 32>}, {transform_indices = @transform_1, window_bounds = array<i64: 8, 32>}, {transform_indices = @transform_2, window_bounds = array<i64: 1, 8, 128>}]} {
    %c0 = arith.constant 0 : index
    %c0_0 = arith.constant 0 : index
    %0 = vector.load %arg1[%c0, %c0_0] : memref<8x32xf32, #tpu.memory_space<vmem>>, vector<8x32xf32>
    %c0_1 = arith.constant 0 : index
    %c0_2 = arith.constant 0 : index
    %1 = vector.load %arg2[%c0_1, %c0_2] : memref<8x32xf32, #tpu.memory_space<vmem>>, vector<8x32xf32>
    %cst = arith.constant dense<0xFF800000> : vector<8xf32>
    %2 = vector.multi_reduction <maximumf>, %0, %cst [1] : vector<8x32xf32> to vector<8xf32>
    %3 = vector.shape_cast %2 : vector<8xf32> to vector<8x1xf32>
    %4 = vector.broadcast %3 : vector<8x1xf32> to vector<8x32xf32>
    %5 = arith.subf %0, %4 : vector<8x32xf32>
    %6 = math.exp %5 : vector<8x32xf32>
    %cst_3 = arith.constant dense<0.000000e+00> : vector<8xf32>
    %7 = vector.multi_reduction <add>, %6, %cst_3 [1] : vector<8x32xf32> to vector<8xf32>
    %8 = vector.shape_cast %7 : vector<8xf32> to vector<8x1xf32>
    %9 = math.log %8 : vector<8x1xf32>
    %10 = vector.broadcast %9 : vector<8x1xf32> to vector<8x32xf32>
    %11 = arith.subf %5, %10 : vector<8x32xf32>
    %cst_4 = arith.constant dense<0xFF800000> : vector<8xf32>
    %12 = vector.multi_reduction <maximumf>, %1, %cst_4 [1] : vector<8x32xf32> to vector<8xf32>
    %13 = vector.shape_cast %12 : vector<8xf32> to vector<8x1xf32>
    %14 = vector.broadcast %13 : vector<8x1xf32> to vector<8x32xf32>
    %15 = arith.subf %1, %14 : vector<8x32xf32>
    %16 = math.exp %15 : vector<8x32xf32>
    %cst_5 = arith.constant dense<0.000000e+00> : vector<8xf32>
    %17 = vector.multi_reduction <add>, %16, %cst_5 [1] : vector<8x32xf32> to vector<8xf32>
    %18 = vector.shape_cast %17 : vector<8xf32> to vector<8x1xf32>
    %19 = math.log %18 : vector<8x1xf32>
    %20 = vector.broadcast %19 : vector<8x1xf32> to vector<8x32xf32>
    %21 = arith.subf %15, %20 : vector<8x32xf32>
    %22 = tpu.reciprocal %18 : vector<8x1xf32> -> vector<8x1xf32>
    %23 = vector.broadcast %22 : vector<8x1xf32> to vector<8x32xf32>
    %24 = arith.mulf %16, %23 : vector<8x32xf32>
    %25 = arith.subf %21, %11 : vector<8x32xf32>
    %26 = arith.mulf %24, %25 : vector<8x32xf32>
    %27 = tpu.iota {dimensions = array<i32: 0>} : vector<8x1xi32>
    %c8_i32 = arith.constant 8 : i32
    %28 = arith.muli %arg0, %c8_i32 : i32
    %29 = vector.broadcast %28 : i32 to vector<8x1xi32>
    %30 = arith.addi %29, %27 : vector<8x1xi32>
    %c8_i32_6 = arith.constant 8 : i32
    %31 = vector.broadcast %c8_i32_6 : i32 to vector<8x1xi32>
    %32 = arith.cmpi slt, %30, %31 : vector<8x1xi32>
    %cst_7 = arith.constant 0.000000e+00 : f32
    %33 = vector.shape_cast %32 : vector<8x1xi1> to vector<8x1xi1>
    %34 = vector.broadcast %33 : vector<8x1xi1> to vector<8x32xi1>
    %35 = vector.broadcast %cst_7 : f32 to vector<8x32xf32>
    %36 = arith.select %34, %26, %35 : vector<8x32xi1>, vector<8x32xf32>
    %37 = vector.shape_cast %36 : vector<8x32xf32> to vector<1x8x32xf32>
    %cst_8 = arith.constant dense<0.000000e+00> : vector<1xf32>
    %38 = vector.multi_reduction <add>, %37, %cst_8 [1, 2] : vector<1x8x32xf32> to vector<1xf32>
    %39 = vector.shape_cast %38 : vector<1xf32> to vector<1x1x1xf32>
    %40 = vector.extract %39[0, 0, 0] : f32 from vector<1x1x1xf32>
    %41 = vector.broadcast %40 : f32 to vector<1x8x128xf32>
    %c0_9 = arith.constant 0 : index
    %c0_10 = arith.constant 0 : index
    %c0_11 = arith.constant 0 : index
    %42 = vector.load %arg3[%c0_9, %c0_10, %c0_11] : memref<1x8x128xf32, #tpu.memory_space<vmem>>, vector<1x8x128xf32>
    tpu.vector_store %arg3[%c0_9, %c0_10, %c0_11], %41 {strides = array<i32>} : memref<1x8x128xf32, #tpu.memory_space<vmem>>, vector<1x8x128xf32>,
    return
  }
  func.func @transform_0(%arg0: i32) -> (i32, i32) {
    %c0_i32 = arith.constant 0 : i32
    %c0_i32_0 = arith.constant 0 : i32
    return %arg0, %c0_i32 : i32, i32
  }
  func.func @transform_1(%arg0: i32) -> (i32, i32) {
    %c0_i32 = arith.constant 0 : i32
    %c0_i32_0 = arith.constant 0 : i32
    return %arg0, %c0_i32 : i32, i32
  }
  func.func @transform_2(%arg0: i32) -> (i32, i32, i32) {
    %c0_i32 = arith.constant 0 : i32
    %c0_i32_0 = arith.constant 0 : i32
    %c0_i32_1 = arith.constant 0 : i32
    return %arg0, %c0_i32, %c0_i32_0 : i32, i32, i32
  }
}

</mosaic_0001>

<llo_original>
// kernel: kl_div_loss_with_logits.1
$region0: #{kl_div_loss_with_logits.1}
  #allocation0 [shape = 'u32[]', space=smem, size = 0x4, offset = 0x4, fixed_abs, tag = 'smem constant byte address 0x4 - core index']
  #allocation1 [shape = 'u32[72,128]{1,0:T(1,128)}', space=vmem, size = 0x9000, scoped, tag = 'internal scratch']
  %s0 = inlined_call_operand.hbm [shape: f32[8,32], index: 0, kind: input, shape index: {}]
  %s1 = inlined_call_operand.hbm [shape: f32[8,32], index: 1, kind: input, shape index: {}]
  %s2 = inlined_call_operand.vmem [shape: f32[1,8,128], index: 2, kind: output, shape index: {}]
  %s3 = sld [smem:[#allocation0]]
  $region26: #{kl_div_loss_with_logits.1} parent=0
    _
  %s5 = ssub.s32 1, %s3
  %s6 = scalar_select 0, %s5, %s3
  $region1: #{kl_div_loss_with_logits.1} parent=0
    #allocation2 [shape = 'u8[4096]{0}', space=vmem, size = 0x1000, scoped, tag = 'input window, operand 0, single buffered']
    #allocation3 [shape = 's32[1]{0}', space=sflag, size = 0x4, scoped, tag = 'scoped memory for kl_div_loss_with_logits.1']
    #allocation4 [shape = 'u8[4096]{0}', space=vmem, size = 0x1000, scoped, tag = 'input window, operand 1, single buffered']
    #allocation5 [shape = 's32[1]{0}', space=sflag, size = 0x4, scoped, tag = 'scoped memory for kl_div_loss_with_logits.1']
    %7 = vsyncpa [#allocation3], 0
    %8 = vsyncpa [#allocation5], 0
    // Predicated region
    $region2: #{kl_div_loss_with_logits.1} parent=1 // pred_check
      _
    $region3: #{kl_div_loss_with_logits.1} parent=1 // pred_check_branch
      %10 = sbr.rel (0) target = $region5
    $region4: #{kl_div_loss_with_logits.1} parent=1 // pred_region
      %12 = vsyncadd [#allocation3], 0
      %s14 = sshll.u32 %s0, 4
      %s15 = int_to_ptr.hbm [resolvable:$true] %s14
      %s16 = sshll.u32 [#allocation2], 4
      %s17 = int_to_ptr.vmem [resolvable:$true] %s16
      %19 = dma.hbm_to_vmem [thread:$0]  %s15, 128, %s17, [#allocation3]
    $region5: #{kl_div_loss_with_logits.1} parent=1 // pred_fallthru
      _
    // Predicated region
    $region6: #{kl_div_loss_with_logits.1} parent=1 // pred_check
      _
    $region7: #{kl_div_loss_with_logits.1} parent=1 // pred_check_branch
      %21 = sbr.rel (0) target = $region9
    $region8: #{kl_div_loss_with_logits.1} parent=1 // pred_region
      %23 = vsyncadd [#allocation5], 0
      %s25 = sshll.u32 %s1, 4
      %s26 = int_to_ptr.hbm [resolvable:$true] %s25
      %s27 = sshll.u32 [#allocation4], 4
      %s28 = int_to_ptr.vmem [resolvable:$true] %s27
      %30 = dma.hbm_to_vmem [thread:$0]  %s26, 128, %s28, [#allocation5]
    $region9: #{kl_div_loss_with_logits.1} parent=1 // pred_fallthru
      _
    // Predicated region
    $region10: #{kl_div_loss_with_logits.1} parent=1 // pred_check
      _
    $region11: #{kl_div_loss_with_logits.1} parent=1 // pred_check_branch
      %32 = sbr.rel (0) target = $region13
    $region12: #{kl_div_loss_with_logits.1} parent=1 // pred_region
      %34 = dma.done [#allocation3], 128
    $region13: #{kl_div_loss_with_logits.1} parent=1 // pred_fallthru
      _
    // Predicated region
    $region14: #{kl_div_loss_with_logits.1} parent=1 // pred_check
      _
    $region15: #{kl_div_loss_with_logits.1} parent=1 // pred_check_branch
      %36 = sbr.rel (0) target = $region17
    $region16: #{kl_div_loss_with_logits.1} parent=1 // pred_region
      %38 = dma.done [#allocation5], 128
    $region17: #{kl_div_loss_with_logits.1} parent=1 // pred_fallthru
      _
    %v39 = vld [vmem:[#allocation2] sm:$0xff]
    %v40 = vld [vmem:[#allocation4] sm:$0xff]
    %vm41 = vcmask 261120
    %v42 = vsel %vm41, %v39, -inf
    %43 = vmax.xlane.f32.xlu0 %v42
    %v44 = vpop.xlane.xlu0 %43
    %v45 = vsub.f32 %v39, %v44
    %v46 = vmul.f32 %v45, 1.442695
    %v47 = vpow.pop %v46
    %v48 = vsel %vm41, %v47, 0.0
    %49 = vadd.xlane.f32.xlu0 %v48
    %v50 = vpop.xlane.xlu0 %49
    %v51 = vlog2.pop %v50
    %v52 = vmul.f32 %v51, 0.6931472
    %v53 = vsub.f32 %v45, %v52
    %v54 = vsel %vm41, %v40, -inf
    %55 = vmax.xlane.f32.xlu0 %v54
    %v56 = vpop.xlane.xlu0 %55
    %v57 = vsub.f32 %v40, %v56
    %v58 = vmul.f32 %v57, 1.442695
    %v59 = vpow.pop %v58
    %v60 = vsel %vm41, %v59, 0.0
    %61 = vadd.xlane.f32.xlu0 %v60
    %v62 = vpop.xlane.xlu0 %61
    %v63 = vlog2.pop %v62
    %v64 = vmul.f32 %v63, 0.6931472
    %v65 = vsub.f32 %v57, %v64
    %v66 = vrcp.pop %v62
    %v67 = vmul.f32 %v62, %v66
    %v68 = vsub.f32 1.0, %v67
    %v69 = vmul.f32 %v66, %v68
    %v70 = vadd.f32 %v66, %v69
    %vm71 = vweird.f32 %v62
    %vm72 = vweird.f32 %v66
    %vm73 = vmor %vm71, %vm72
    %v74 = vsel %vm73, %v66, %v70
    %v75 = vand.u32 2147483647, %v62
    %vm76 = vcmp.eq.f32.partialorder %v75, 8.507059e+37
    %v77 = vand.u32 %v62, 2147483648
    %v78 = vor.u32 1.1754944e-38, %v77
    %v79 = vsel %vm76, %v78, %v74
    %v80 = vmul.f32 %v59, %v79
    %v81 = vsub.f32 %v65, %v53
    %v82 = vmul.f32 %v80, %v81
    %v83 = vlaneseq
    %v84 = vshrl.u32 %v83, 7
    %s85 = smul.u32 0, 8
    %v86 = vstv %s85
    %v87 = vadd.s32 %v86, %v84
    %vm88 = vcmp.lt.s32.totalorder %v87, 8
    %v89 = vsel %vm88, 1, 0
    %vm90 = vcmp.eq.s32.totalorder %v89, 1
    %v91 = vsel %vm90, %v82, 0.0
    %v92 = vsel %vm41, %v91, 0.0
    %93 = vadd.xlane.f32.xlu0 %v92
    %v94 = vpop.xlane.xlu0 %93
    %v95 = vrot.slane %v94, 4
    %v96 = vadd.f32 %v94, %v95
    %v97 = vrot.slane %v96, 2
    %v98 = vadd.f32 %v96, %v97
    %v99 = vrot.slane %v98, 1
    %v100 = vadd.f32 %v98, %v99
    %s101 = vtos %v100
    %v102 = vstv %s101
    %103 = vst [vmem:[%s2] sm:$0xff] %v102
    // Predicated region
    $region18: #{kl_div_loss_with_logits.1} parent=1 // pred_check
      _
    $region19: #{kl_div_loss_with_logits.1} parent=1 // pred_check_branch
      %105 = sbr.rel (0) target = $region21
    $region20: #{kl_div_loss_with_logits.1} parent=1 // pred_region
      _
    $region21: #{kl_div_loss_with_logits.1} parent=1 // pred_fallthru
      _
    // Predicated region
    $region22: #{kl_div_loss_with_logits.1} parent=1 // pred_check
      _
    $region23: #{kl_div_loss_with_logits.1} parent=1 // pred_check_branch
      %107 = sbr.rel (0) target = $region25
    $region24: #{kl_div_loss_with_logits.1} parent=1 // pred_region
      _
    $region25: #{kl_div_loss_with_logits.1} parent=1 // pred_fallthru
      _
    %108 = vsyncpa [#allocation3], 1
    %109 = vsyncpa [#allocation5], 1

</llo_original>
